<compile_context>
chip_gen: v7x
topology: tpu7x:2x2x1
jax: 0.10.0
libtpu: 0.0.40
codegen_flags: <defaults>
</compile_context>

<pallas_src>
import jax
import jax.numpy as jnp
from jax import lax
from jax.experimental import pallas as pl
from jax.experimental.pallas import tpu as pltpu

EPS = 1e-5
LANES = 128


def module_forward(x_nchw, w_dw, gamma, beta, w_pw):
    """x_nchw: (N,122,H,W); w_dw: (122,1,3,3); gamma/beta: (122,); w_pw: (122,122,1,1)."""
    N, C, H, W = x_nchw.shape
    Ho = (H + 2 - 3) // 2 + 1
    Wo = (W + 2 - 3) // 2 + 1
    Cp = LANES * ((C + LANES - 1) // LANES)          # 122 -> 128 (lane-dense)
    pc = Cp - C

    # ---- glue: NCHW -> NHWC, spatial pad (1,1), channel pad to 128 ----
    x = jnp.transpose(x_nchw, (0, 2, 3, 1)).astype(jnp.float32)
    ph_extra = (H + 2) % 2                            # make padded extents even
    pw_extra = (W + 2) % 2
    xp = jnp.pad(x, ((0, 0), (1, 1 + ph_extra), (1, 1 + pw_extra), (0, pc)))
    Hp, Wp = H + 2 + ph_extra, W + 2 + pw_extra
    Hh, Ww = Hp // 2, Wp // 2

    # ---- stride-2 phase split: kernel reads all 9 taps with unit-stride views ----
    # xph[(p*2+q)*N + n, i, j, c] == xp[n, 2*i+p, 2*j+q, c]
    xph = xp.reshape(N, Hh, 2, Ww, 2, Cp)
    xph = jnp.transpose(xph, (2, 4, 0, 1, 3, 5)).reshape(4 * N, Hh, Ww, Cp)

    # ---- weights / BN params (zero-padded on the channel axis) ----
    dww = jnp.transpose(w_dw[:, 0, :, :], (1, 2, 0)).reshape(9, 1, C)
    dww = jnp.pad(dww.astype(jnp.float32), ((0, 0), (0, 0), (0, pc)))   # (9,1,Cp)
    pwt = jnp.transpose(w_pw[:, :, 0, 0], (1, 0)).astype(jnp.float32)   # (C_in,C_out)
    pwt = jnp.pad(pwt, ((0, pc), (0, pc)))                              # (Cp,Cp)
    gamma2 = jnp.pad(gamma.astype(jnp.float32).reshape(1, C), ((0, 0), (0, pc)))
    beta2 = jnp.pad(beta.astype(jnp.float32).reshape(1, C), ((0, 0), (0, pc)))

    rows = N * Ho * Wo

    def kernel(xph_ref, dww_ref, gamma_ref, beta_ref, pwt_ref, out_ref):
        # ---- depthwise 3x3 / stride 2: MAC over 9 unit-stride phase views (VPU) ----
        acc = None
        for kh in range(3):
            off_h, ph_h = kh // 2, kh % 2
            for kw in range(3):
                off_w, ph_w = kw // 2, kw % 2
                p = ph_h * 2 + ph_w
                tap = xph_ref[p * N:(p + 1) * N,
                              off_h:off_h + Ho,
                              off_w:off_w + Wo, :]            # (N, Ho, Wo, Cp)
                term = tap * dww_ref[3 * kh + kw]             # broadcast (1, Cp)
                acc = term if acc is None else acc + term

        flat = acc.reshape(rows, Cp)                          # lane-dense 2-D slab

        # ---- BatchNorm2d (training): per-channel batch mean / biased variance ----
        inv_rows = 1.0 / rows
        mean = jnp.sum(flat, axis=0, keepdims=True) * inv_rows       # (1, Cp)
        msq = jnp.sum(flat * flat, axis=0, keepdims=True) * inv_rows
        var = jnp.maximum(msq - mean * mean, 0.0)
        s = gamma_ref[...] * lax.rsqrt(var + EPS)                    # (1, Cp)
        shift = beta_ref[...] - mean * s                             # (1, Cp)

        # ---- BN folded into the 1x1 conv: ((x-mean)*s+beta)@W == (x*s+shift)@W ----
        out_ref[...] = jnp.dot(flat * s + shift, pwt_ref[...],
                               preferred_element_type=jnp.float32)

    vmem = pl.BlockSpec(memory_space=pltpu.MemorySpace.VMEM)
    out_flat = pl.pallas_call(
        kernel,
        out_shape=jax.ShapeDtypeStruct((rows, Cp), jnp.float32),
        in_specs=[vmem, vmem, vmem, vmem, vmem],
        out_specs=vmem,
    )(xph, dww, gamma2, beta2, pwt)

    out_nhwc = out_flat.reshape(N, Ho, Wo, Cp)[..., :C]
    return jnp.transpose(out_nhwc, (0, 3, 1, 2))              # back to NCHW


if __name__ == "__main__":
    key = jax.random.PRNGKey(0)
    k1, k2, k3, k4, k5 = jax.random.split(key, 5)

    # small shapes consistent with the module (channel count 122 is fixed by __init__)
    N, C, H, W = 1, 122, 16, 16
    x12 = jax.random.normal(k1, (N, C, H, W), jnp.float32)

    w_dw = jax.random.normal(k2, (C, 1, 3, 3), jnp.float32) / 3.0          # conv2d4.weight
    w_pw = jax.random.normal(k3, (C, C, 1, 1), jnp.float32) / jnp.sqrt(C)  # conv2d5.weight
    gamma = 1.0 + 0.1 * jax.random.normal(k4, (C,), jnp.float32)           # bn.weight
    beta = 0.1 * jax.random.normal(k5, (C,), jnp.float32)                  # bn.bias
    # TODO(synk): BatchNorm running_mean/var momentum update is module state, not part
    # of the forward output, so it is not materialized here.

    out = jax.block_until_ready(module_forward(x12, w_dw, gamma, beta, w_pw))

    # pure-JAX reference (NCHW, lax.conv) to validate the kernel
    y13 = lax.conv_general_dilated(
        x12, w_dw, window_strides=(2, 2), padding=((1, 1), (1, 1)),
        feature_group_count=C, dimension_numbers=('NCHW', 'OIHW', 'NCHW'))
    mu = jnp.mean(y13, axis=(0, 2, 3), keepdims=True)
    var = jnp.mean((y13 - mu) ** 2, axis=(0, 2, 3), keepdims=True)
    y14 = (y13 - mu) / jnp.sqrt(var + EPS) * gamma.reshape(1, C, 1, 1) + beta.reshape(1, C, 1, 1)
    ref = lax.conv_general_dilated(
        y14, w_pw, window_strides=(1, 1), padding='VALID',
        dimension_numbers=('NCHW', 'OIHW', 'NCHW'))

    assert out.shape == ref.shape, (out.shape, ref.shape)
    err = float(jnp.max(jnp.abs(out - ref)))
    assert jnp.allclose(out, ref, rtol=1e-4, atol=1e-4), f"max abs err={err}"
    print("KERNEL_OK")
</pallas_src>

<mosaic_0001>
module attributes {stable_mosaic.version = 11 : i64} {
  func.func @kernel(%arg0: memref<4x9x9x128xf32, #tpu.memory_space<vmem>>, %arg1: memref<9x1x128xf32, #tpu.memory_space<vmem>>, %arg2: memref<1x128xf32, #tpu.memory_space<vmem>>, %arg3: memref<1x128xf32, #tpu.memory_space<vmem>>, %arg4: memref<128x128xf32, #tpu.memory_space<vmem>>, %arg5: memref<64x128xf32, #tpu.memory_space<vmem>>) attributes {dimension_semantics = [], scalar_prefetch = 0 : i64, scratch_operands = 0 : i64, tpu.core_type = #tpu.core_type<tc>} {
    %c0 = arith.constant 0 : index
    %c0_0 = arith.constant 0 : index
    %c0_1 = arith.constant 0 : index
    %c0_2 = arith.constant 0 : index
    %0 = vector.load %arg0[%c0, %c0_0, %c0_1, %c0_2] : memref<4x9x9x128xf32, #tpu.memory_space<vmem>>, vector<1x8x8x128xf32>
    %c0_3 = arith.constant 0 : index
    %c0_4 = arith.constant 0 : index
    %c0_5 = arith.constant 0 : index
    %1 = vector.load %arg1[%c0_3, %c0_4, %c0_5] : memref<9x1x128xf32, #tpu.memory_space<vmem>>, vector<1x1x128xf32>
    %2 = vector.shape_cast %1 : vector<1x1x128xf32> to vector<1x128xf32>
    %3 = vector.shape_cast %2 : vector<1x128xf32> to vector<1x1x1x128xf32>
    %4 = vector.broadcast %3 : vector<1x1x1x128xf32> to vector<1x8x8x128xf32>
    %5 = arith.mulf %0, %4 : vector<1x8x8x128xf32>
    %c1 = arith.constant 1 : index
    %c0_6 = arith.constant 0 : index
    %c0_7 = arith.constant 0 : index
    %c0_8 = arith.constant 0 : index
    %6 = vector.load %arg0[%c1, %c0_6, %c0_7, %c0_8] : memref<4x9x9x128xf32, #tpu.memory_space<vmem>>, vector<1x8x8x128xf32>
    %c1_9 = arith.constant 1 : index
    %c0_10 = arith.constant 0 : index
    %c0_11 = arith.constant 0 : index
    %7 = vector.load %arg1[%c1_9, %c0_10, %c0_11] : memref<9x1x128xf32, #tpu.memory_space<vmem>>, vector<1x1x128xf32>
    %8 = vector.shape_cast %7 : vector<1x1x128xf32> to vector<1x128xf32>
    %9 = vector.shape_cast %8 : vector<1x128xf32> to vector<1x1x1x128xf32>
    %10 = vector.broadcast %9 : vector<1x1x1x128xf32> to vector<1x8x8x128xf32>
    %11 = arith.mulf %6, %10 : vector<1x8x8x128xf32>
    %12 = arith.addf %5, %11 : vector<1x8x8x128xf32>
    %c0_12 = arith.constant 0 : index
    %c0_13 = arith.constant 0 : index
    %c1_14 = arith.constant 1 : index
    %c0_15 = arith.constant 0 : index
    %13 = vector.load %arg0[%c0_12, %c0_13, %c1_14, %c0_15] : memref<4x9x9x128xf32, #tpu.memory_space<vmem>>, vector<1x8x8x128xf32>
    %c2 = arith.constant 2 : index
    %c0_16 = arith.constant 0 : index
    %c0_17 = arith.constant 0 : index
    %14 = vector.load %arg1[%c2, %c0_16, %c0_17] : memref<9x1x128xf32, #tpu.memory_space<vmem>>, vector<1x1x128xf32>
    %15 = vector.shape_cast %14 : vector<1x1x128xf32> to vector<1x128xf32>
    %16 = vector.shape_cast %15 : vector<1x128xf32> to vector<1x1x1x128xf32>
    %17 = vector.broadcast %16 : vector<1x1x1x128xf32> to vector<1x8x8x128xf32>
    %18 = arith.mulf %13, %17 : vector<1x8x8x128xf32>
    %19 = arith.addf %12, %18 : vector<1x8x8x128xf32>
    %c2_18 = arith.constant 2 : index
    %c0_19 = arith.constant 0 : index
    %c0_20 = arith.constant 0 : index
    %c0_21 = arith.constant 0 : index
    %20 = vector.load %arg0[%c2_18, %c0_19, %c0_20, %c0_21] : memref<4x9x9x128xf32, #tpu.memory_space<vmem>>, vector<1x8x8x128xf32>
    %c3 = arith.constant 3 : index
    %c0_22 = arith.constant 0 : index
    %c0_23 = arith.constant 0 : index
    %21 = vector.load %arg1[%c3, %c0_22, %c0_23] : memref<9x1x128xf32, #tpu.memory_space<vmem>>, vector<1x1x128xf32>
    %22 = vector.shape_cast %21 : vector<1x1x128xf32> to vector<1x128xf32>
    %23 = vector.shape_cast %22 : vector<1x128xf32> to vector<1x1x1x128xf32>
    %24 = vector.broadcast %23 : vector<1x1x1x128xf32> to vector<1x8x8x128xf32>
    %25 = arith.mulf %20, %24 : vector<1x8x8x128xf32>
    %26 = arith.addf %19, %25 : vector<1x8x8x128xf32>
    %c3_24 = arith.constant 3 : index
    %c0_25 = arith.constant 0 : index
    %c0_26 = arith.constant 0 : index
    %c0_27 = arith.constant 0 : index
    %27 = vector.load %arg0[%c3_24, %c0_25, %c0_26, %c0_27] : memref<4x9x9x128xf32, #tpu.memory_space<vmem>>, vector<1x8x8x128xf32>
    %c4 = arith.constant 4 : index
    %c0_28 = arith.constant 0 : index
    %c0_29 = arith.constant 0 : index
    %28 = vector.load %arg1[%c4, %c0_28, %c0_29] : memref<9x1x128xf32, #tpu.memory_space<vmem>>, vector<1x1x128xf32>
    %29 = vector.shape_cast %28 : vector<1x1x128xf32> to vector<1x128xf32>
    %30 = vector.shape_cast %29 : vector<1x128xf32> to vector<1x1x1x128xf32>
    %31 = vector.broadcast %30 : vector<1x1x1x128xf32> to vector<1x8x8x128xf32>
    %32 = arith.mulf %27, %31 : vector<1x8x8x128xf32>
    %33 = arith.addf %26, %32 : vector<1x8x8x128xf32>
    %c2_30 = arith.constant 2 : index
    %c0_31 = arith.constant 0 : index
    %c1_32 = arith.constant 1 : index
    %c0_33 = arith.constant 0 : index
    %34 = vector.load %arg0[%c2_30, %c0_31, %c1_32, %c0_33] : memref<4x9x9x128xf32, #tpu.memory_space<vmem>>, vector<1x8x8x128xf32>
    %c5 = arith.constant 5 : index
    %c0_34 = arith.constant 0 : index
    %c0_35 = arith.constant 0 : index
    %35 = vector.load %arg1[%c5, %c0_34, %c0_35] : memref<9x1x128xf32, #tpu.memory_space<vmem>>, vector<1x1x128xf32>
    %36 = vector.shape_cast %35 : vector<1x1x128xf32> to vector<1x128xf32>
    %37 = vector.shape_cast %36 : vector<1x128xf32> to vector<1x1x1x128xf32>
    %38 = vector.broadcast %37 : vector<1x1x1x128xf32> to vector<1x8x8x128xf32>
    %39 = arith.mulf %34, %38 : vector<1x8x8x128xf32>
    %40 = arith.addf %33, %39 : vector<1x8x8x128xf32>
    %c0_36 = arith.constant 0 : index
    %c1_37 = arith.constant 1 : index
    %c0_38 = arith.constant 0 : index
    %c0_39 = arith.constant 0 : index
    %41 = vector.load %arg0[%c0_36, %c1_37, %c0_38, %c0_39] : memref<4x9x9x128xf32, #tpu.memory_space<vmem>>, vector<1x8x8x128xf32>
    %c6 = arith.constant 6 : index
    %c0_40 = arith.constant 0 : index
    %c0_41 = arith.constant 0 : index
    %42 = vector.load %arg1[%c6, %c0_40, %c0_41] : memref<9x1x128xf32, #tpu.memory_space<vmem>>, vector<1x1x128xf32>
    %43 = vector.shape_cast %42 : vector<1x1x128xf32> to vector<1x128xf32>
    %44 = vector.shape_cast %43 : vector<1x128xf32> to vector<1x1x1x128xf32>
    %45 = vector.broadcast %44 : vector<1x1x1x128xf32> to vector<1x8x8x128xf32>
    %46 = arith.mulf %41, %45 : vector<1x8x8x128xf32>
    %47 = arith.addf %40, %46 : vector<1x8x8x128xf32>
    %c1_42 = arith.constant 1 : index
    %c1_43 = arith.constant 1 : index
    %c0_44 = arith.constant 0 : index
    %c0_45 = arith.constant 0 : index
    %48 = vector.load %arg0[%c1_42, %c1_43, %c0_44, %c0_45] : memref<4x9x9x128xf32, #tpu.memory_space<vmem>>, vector<1x8x8x128xf32>
    %c7 = arith.constant 7 : index
    %c0_46 = arith.constant 0 : index
    %c0_47 = arith.constant 0 : index
    %49 = vector.load %arg1[%c7, %c0_46, %c0_47] : memref<9x1x128xf32, #tpu.memory_space<vmem>>, vector<1x1x128xf32>
    %50 = vector.shape_cast %49 : vector<1x1x128xf32> to vector<1x128xf32>
    %51 = vector.shape_cast %50 : vector<1x128xf32> to vector<1x1x1x128xf32>
    %52 = vector.broadcast %51 : vector<1x1x1x128xf32> to vector<1x8x8x128xf32>
    %53 = arith.mulf %48, %52 : vector<1x8x8x128xf32>
    %54 = arith.addf %47, %53 : vector<1x8x8x128xf32>
    %c0_48 = arith.constant 0 : index
    %c1_49 = arith.constant 1 : index
    %c1_50 = arith.constant 1 : index
    %c0_51 = arith.constant 0 : index
    %55 = vector.load %arg0[%c0_48, %c1_49, %c1_50, %c0_51] : memref<4x9x9x128xf32, #tpu.memory_space<vmem>>, vector<1x8x8x128xf32>
    %c8 = arith.constant 8 : index
    %c0_52 = arith.constant 0 : index
    %c0_53 = arith.constant 0 : index
    %56 = vector.load %arg1[%c8, %c0_52, %c0_53] : memref<9x1x128xf32, #tpu.memory_space<vmem>>, vector<1x1x128xf32>
    %57 = vector.shape_cast %56 : vector<1x1x128xf32> to vector<1x128xf32>
    %58 = vector.shape_cast %57 : vector<1x128xf32> to vector<1x1x1x128xf32>
    %59 = vector.broadcast %58 : vector<1x1x1x128xf32> to vector<1x8x8x128xf32>
    %60 = arith.mulf %55, %59 : vector<1x8x8x128xf32>
    %61 = arith.addf %54, %60 : vector<1x8x8x128xf32>
    %62 = vector.shape_cast %61 : vector<1x8x8x128xf32> to vector<64x128xf32>
    %cst = arith.constant dense<0.000000e+00> : vector<128xf32>
    %63 = vector.multi_reduction <add>, %62, %cst [0] : vector<64x128xf32> to vector<128xf32>
    %64 = vector.shape_cast %63 : vector<128xf32> to vector<1x128xf32>
    %cst_54 = arith.constant 1.562500e-02 : f32
    %65 = vector.broadcast %cst_54 : f32 to vector<1x128xf32>
    %66 = arith.mulf %64, %65 : vector<1x128xf32>
    %67 = arith.mulf %62, %62 : vector<64x128xf32>
    %cst_55 = arith.constant dense<0.000000e+00> : vector<128xf32>
    %68 = vector.multi_reduction <add>, %67, %cst_55 [0] : vector<64x128xf32> to vector<128xf32>
    %69 = vector.shape_cast %68 : vector<128xf32> to vector<1x128xf32>
    %cst_56 = arith.constant 1.562500e-02 : f32
    %70 = vector.broadcast %cst_56 : f32 to vector<1x128xf32>
    %71 = arith.mulf %69, %70 : vector<1x128xf32>
    %72 = arith.mulf %66, %66 : vector<1x128xf32>
    %73 = arith.subf %71, %72 : vector<1x128xf32>
    %cst_57 = arith.constant 0.000000e+00 : f32
    %74 = vector.broadcast %cst_57 : f32 to vector<1x128xf32>
    %75 = arith.maximumf %73, %74 : vector<1x128xf32>
    %c0_58 = arith.constant 0 : index
    %c0_59 = arith.constant 0 : index
    %76 = vector.load %arg2[%c0_58, %c0_59] : memref<1x128xf32, #tpu.memory_space<vmem>>, vector<1x128xf32>
    %cst_60 = arith.constant 9.99999974E-6 : f32
    %77 = vector.broadcast %cst_60 : f32 to vector<1x128xf32>
    %78 = arith.addf %75, %77 : vector<1x128xf32>
    %79 = math.rsqrt %78 : vector<1x128xf32>
    %80 = arith.mulf %76, %79 : vector<1x128xf32>
    %c0_61 = arith.constant 0 : index
    %c0_62 = arith.constant 0 : index
    %81 = vector.load %arg3[%c0_61, %c0_62] : memref<1x128xf32, #tpu.memory_space<vmem>>, vector<1x128xf32>
    %82 = arith.mulf %66, %80 : vector<1x128xf32>
    %83 = arith.subf %81, %82 : vector<1x128xf32>
    %84 = vector.broadcast %80 : vector<1x128xf32> to vector<64x128xf32>
    %85 = arith.mulf %62, %84 : vector<64x128xf32>
    %86 = vector.broadcast %83 : vector<1x128xf32> to vector<64x128xf32>
    %87 = arith.addf %85, %86 : vector<64x128xf32>
    %c0_63 = arith.constant 0 : index
    %c0_64 = arith.constant 0 : index
    %88 = vector.load %arg4[%c0_63, %c0_64] : memref<128x128xf32, #tpu.memory_space<vmem>>, vector<128x128xf32>
    %cst_65 = arith.constant dense<0.000000e+00> : vector<64x128xf32>
    %89 = tpu.matmul %87, %88, %cst_65 {dimension_numbers = #tpu.dot_dimension_numbers<[1], [0], [0], [1], [0, 0, 1, 1], [], []>} : vector<64x128xf32>, vector<128x128xf32>, vector<64x128xf32> -> vector<64x128xf32>
    %c0_66 = arith.constant 0 : index
    %c0_67 = arith.constant 0 : index
    %90 = vector.load %arg5[%c0_66, %c0_67] : memref<64x128xf32, #tpu.memory_space<vmem>>, vector<64x128xf32>
    tpu.vector_store %arg5[%c0_66, %c0_67], %89 {strides = array<i32>} : memref<64x128xf32, #tpu.memory_space<vmem>>, vector<64x128xf32>,
    return
  }
}

</mosaic_0001>

<llo_original>
// kernel: tpu_custom_call.1
$region0: #{tpu_custom_call.1}
  #allocation0 [shape = 'u32[]', space=smem, size = 0x4, offset = 0x4, fixed_abs, tag = 'smem constant byte address 0x4 - core index']
  #allocation1 [shape = 'u32[144,128]{1,0:T(1,128)}', space=vmem, size = 0x12000, scoped, tag = 'internal scratch']
  %s0 = inlined_call_operand.vmem [shape: f32[4,9,9,128], index: 0, kind: input, shape index: {}]
  %s1 = inlined_call_operand.vmem [shape: f32[9,1,128], index: 1, kind: input, shape index: {}]
  %s2 = inlined_call_operand.vmem [shape: f32[1,128], index: 2, kind: input, shape index: {}]
  %s3 = inlined_call_operand.vmem [shape: f32[1,128], index: 3, kind: input, shape index: {}]
  %s4 = inlined_call_operand.vmem [shape: f32[128,128], index: 4, kind: input, shape index: {}]
  %s5 = inlined_call_operand.hbm [shape: f32[64,128], index: 5, kind: output, shape index: {}]
  %s6 = sld [smem:[#allocation0]]
  $region30: #{tpu_custom_call.1} parent=0
    _
  %s8 = ssub.s32 1, %s6
  %s9 = scalar_select 0, %s8, %s6
  $region1: #{tpu_custom_call.1} parent=0
    #allocation2 [shape = 'u8[32768]{0}', space=vmem, size = 0x8000, scoped, tag = 'output window, operand 0, single buffered']
    #allocation3 [shape = 's32[1]{0}', space=sflag, size = 0x4, scoped, tag = 'scoped memory for tpu_custom_call.1']
    %10 = vsyncpa [#allocation3], 0
    // Predicated region
    $region2: #{tpu_custom_call.1} parent=1 // pred_check
      _
    $region3: #{tpu_custom_call.1} parent=1 // pred_check_branch
      %12 = sbr.rel (0) target = $region5
    $region4: #{tpu_custom_call.1} parent=1 // pred_region
      _
    $region5: #{tpu_custom_call.1} parent=1 // pred_fallthru
      _
    // Predicated region
    $region6: #{tpu_custom_call.1} parent=1 // pred_check
      _
    $region7: #{tpu_custom_call.1} parent=1 // pred_check_branch
      %14 = sbr.rel (0) target = $region9
    $region8: #{tpu_custom_call.1} parent=1 // pred_region
      _
    $region9: #{tpu_custom_call.1} parent=1 // pred_fallthru
      _
    // Predicated region
    $region10: #{tpu_custom_call.1} parent=1 // pred_check
      _
    $region11: #{tpu_custom_call.1} parent=1 // pred_check_branch
      %16 = sbr.rel (0) target = $region13
    $region12: #{tpu_custom_call.1} parent=1 // pred_region
      _
    $region13: #{tpu_custom_call.1} parent=1 // pred_fallthru
      _
    // Predicated region
    $region14: #{tpu_custom_call.1} parent=1 // pred_check
      _
    $region15: #{tpu_custom_call.1} parent=1 // pred_check_branch
      %18 = sbr.rel (0) target = $region17
    $region16: #{tpu_custom_call.1} parent=1 // pred_region
      _
    $region17: #{tpu_custom_call.1} parent=1 // pred_fallthru
      _
    // Predicated region
    $region18: #{tpu_custom_call.1} parent=1 // pred_check
      _
    $region19: #{tpu_custom_call.1} parent=1 // pred_check_branch
      %20 = sbr.rel (0) target = $region21
    $region20: #{tpu_custom_call.1} parent=1 // pred_region
      _
    $region21: #{tpu_custom_call.1} parent=1 // pred_fallthru
      _
    %v21 = vld [vmem:[%s0] sm:$0xff]
    %v22 = vld [vmem:[%s0 + $0x10] sm:$0xff]
    %v23 = vld [vmem:[%s0 + $0x20] sm:$0xff]
    %v24 = vld [vmem:[%s0 + $0x30] sm:$0xff]
    %v25 = vld [vmem:[%s0 + $0x40] sm:$0xff]
    %v26 = vld [vmem:[%s0 + $0x50] sm:$0xff]
    %v27 = vld [vmem:[%s0 + $0x60] sm:$0xff]
    %v28 = vld [vmem:[%s0 + $0x70] sm:$0xff]
    %v29 = vld [vmem:[%s1] sm:$0x1]
    %v31 = vlaneseq
    %v32 = vshrl.u32 %v31, 7
    %v33 = vsub.s32 0, %v32
    %v34 = vrot.slane %v29, %v33
    %v36 = vmul.f32 %v21, %v34
    %v37 = vmul.f32 %v22, %v34
    %v38 = vmul.f32 %v23, %v34
    %v39 = vmul.f32 %v24, %v34
    %v40 = vmul.f32 %v25, %v34
    %v41 = vmul.f32 %v26, %v34
    %v42 = vmul.f32 %v27, %v34
    %v43 = vmul.f32 %v28, %v34
    %s44 = scalar_lea.vmem %s0, 144
    %v45 = vld [vmem:[%s44] sm:$0xff]
    %v46 = vld [vmem:[%s44 + $0x10] sm:$0xff]
    %v47 = vld [vmem:[%s44 + $0x20] sm:$0xff]
    %v48 = vld [vmem:[%s44 + $0x30] sm:$0xff]
    %v49 = vld [vmem:[%s44 + $0x40] sm:$0xff]
    %v50 = vld [vmem:[%s44 + $0x50] sm:$0xff]
    %v51 = vld [vmem:[%s44 + $0x60] sm:$0xff]
    %v52 = vld [vmem:[%s44 + $0x70] sm:$0xff]
    %s53 = scalar_lea.vmem %s1, 1
    %v54 = vld [vmem:[%s53] sm:$0x1]
    %v56 = vlaneseq
    %v57 = vshrl.u32 %v56, 7
    %v58 = vsub.s32 0, %v57
    %v59 = vrot.slane %v54, %v58
    %v61 = vmul.f32 %v45, %v59
    %v62 = vmul.f32 %v46, %v59
    %v63 = vmul.f32 %v47, %v59
    %v64 = vmul.f32 %v48, %v59
    %v65 = vmul.f32 %v49, %v59
    %v66 = vmul.f32 %v50, %v59
    %v67 = vmul.f32 %v51, %v59
    %v68 = vmul.f32 %v52, %v59
    %v69 = vadd.f32 %v36, %v61
    %v70 = vadd.f32 %v37, %v62
    %v71 = vadd.f32 %v38, %v63
    %v72 = vadd.f32 %v39, %v64
    %v73 = vadd.f32 %v40, %v65
    %v74 = vadd.f32 %v41, %v66
    %v75 = vadd.f32 %v42, %v67
    %v76 = vadd.f32 %v43, %v68
    %v77 = vld [vmem:[%s0 + $0x1] sm:$0xff]
    %v78 = vld [vmem:[%s0 + $0x11] sm:$0xff]
    %v79 = vld [vmem:[%s0 + $0x21] sm:$0xff]
    %v80 = vld [vmem:[%s0 + $0x31] sm:$0xff]
    %v81 = vld [vmem:[%s0 + $0x41] sm:$0xff]
    %v82 = vld [vmem:[%s0 + $0x51] sm:$0xff]
    %v83 = vld [vmem:[%s0 + $0x61] sm:$0xff]
    %v84 = vld [vmem:[%s0 + $0x71] sm:$0xff]
    %s85 = scalar_lea.vmem %s1, 2
    %v86 = vld [vmem:[%s85] sm:$0x1]
    %v88 = vlaneseq
    %v89 = vshrl.u32 %v88, 7
    %v90 = vsub.s32 0, %v89
    %v91 = vrot.slane %v86, %v90
    %v93 = vmul.f32 %v77, %v91
    %v94 = vmul.f32 %v78, %v91
    %v95 = vmul.f32 %v79, %v91
    %v96 = vmul.f32 %v80, %v91
    %v97 = vmul.f32 %v81, %v91
    %v98 = vmul.f32 %v82, %v91
    %v99 = vmul.f32 %v83, %v91
    %v100 = vmul.f32 %v84, %v91
    %v101 = vadd.f32 %v69, %v93
    %v102 = vadd.f32 %v70, %v94
    %v103 = vadd.f32 %v71, %v95
    %v104 = vadd.f32 %v72, %v96
    %v105 = vadd.f32 %v73, %v97
    %v106 = vadd.f32 %v74, %v98
    %v107 = vadd.f32 %v75, %v99
    %v108 = vadd.f32 %v76, %v100
    %s109 = scalar_lea.vmem %s0, 288
    %v110 = vld [vmem:[%s109] sm:$0xff]
    %v111 = vld [vmem:[%s109 + $0x10] sm:$0xff]
    %v112 = vld [vmem:[%s109 + $0x20] sm:$0xff]
    %v113 = vld [vmem:[%s109 + $0x30] sm:$0xff]
    %v114 = vld [vmem:[%s109 + $0x40] sm:$0xff]
    %v115 = vld [vmem:[%s109 + $0x50] sm:$0xff]
    %v116 = vld [vmem:[%s109 + $0x60] sm:$0xff]
    %v117 = vld [vmem:[%s109 + $0x70] sm:$0xff]
    %s118 = scalar_lea.vmem %s1, 3
    %v119 = vld [vmem:[%s118] sm:$0x1]
    %v121 = vlaneseq
    %v122 = vshrl.u32 %v121, 7
    %v123 = vsub.s32 0, %v122
    %v124 = vrot.slane %v119, %v123
    %v126 = vmul.f32 %v110, %v124
    %v127 = vmul.f32 %v111, %v124
    %v128 = vmul.f32 %v112, %v124
    %v129 = vmul.f32 %v113, %v124
    %v130 = vmul.f32 %v114, %v124
    %v131 = vmul.f32 %v115, %v124
    %v132 = vmul.f32 %v116, %v124
    %v133 = vmul.f32 %v117, %v124
    %v134 = vadd.f32 %v101, %v126
    %v135 = vadd.f32 %v102, %v127
    %v136 = vadd.f32 %v103, %v128
    %v137 = vadd.f32 %v104, %v129
    %v138 = vadd.f32 %v105, %v130
    %v139 = vadd.f32 %v106, %v131
    %v140 = vadd.f32 %v107, %v132
    %v141 = vadd.f32 %v108, %v133
    %s142 = scalar_lea.vmem %s0, 432
    %v143 = vld [vmem:[%s142] sm:$0xff]
    %v144 = vld [vmem:[%s142 + $0x10] sm:$0xff]
    %v145 = vld [vmem:[%s142 + $0x20] sm:$0xff]
    %v146 = vld [vmem:[%s142 + $0x30] sm:$0xff]
    %v147 = vld [vmem:[%s142 + $0x40] sm:$0xff]
    %v148 = vld [vmem:[%s142 + $0x50] sm:$0xff]
    %v149 = vld [vmem:[%s142 + $0x60] sm:$0xff]
    %v150 = vld [vmem:[%s142 + $0x70] sm:$0xff]
    %s151 = scalar_lea.vmem %s1, 4
    %v152 = vld [vmem:[%s151] sm:$0x1]
    %v154 = vlaneseq
    %v155 = vshrl.u32 %v154, 7
    %v156 = vsub.s32 0, %v155
    %v157 = vrot.slane %v152, %v156
    %v159 = vmul.f32 %v143, %v157
    %v160 = vmul.f32 %v144, %v157
    %v161 = vmul.f32 %v145, %v157
    %v162 = vmul.f32 %v146, %v157
    %v163 = vmul.f32 %v147, %v157
    %v164 = vmul.f32 %v148, %v157
    %v165 = vmul.f32 %v149, %v157
    %v166 = vmul.f32 %v150, %v157
    %v167 = vadd.f32 %v134, %v159
    %v168 = vadd.f32 %v135, %v160
    %v169 = vadd.f32 %v136, %v161
    %v170 = vadd.f32 %v137, %v162
    %v171 = vadd.f32 %v138, %v163
    %v172 = vadd.f32 %v139, %v164
    %v173 = vadd.f32 %v140, %v165
    %v174 = vadd.f32 %v141, %v166
    %v175 = vld [vmem:[%s109 + $0x1] sm:$0xff]
    %v176 = vld [vmem:[%s109 + $0x11] sm:$0xff]
    %v177 = vld [vmem:[%s109 + $0x21] sm:$0xff]
    %v178 = vld [vmem:[%s109 + $0x31] sm:$0xff]
    %v179 = vld [vmem:[%s109 + $0x41] sm:$0xff]
    %v180 = vld [vmem:[%s109 + $0x51] sm:$0xff]
    %v181 = vld [vmem:[%s109 + $0x61] sm:$0xff]
    %v182 = vld [vmem:[%s109 + $0x71] sm:$0xff]
    %s183 = scalar_lea.vmem %s1, 5
    %v184 = vld [vmem:[%s183] sm:$0x1]
    %v186 = vlaneseq
    %v187 = vshrl.u32 %v186, 7
    %v188 = vsub.s32 0, %v187
    %v189 = vrot.slane %v184, %v188
    %v191 = vmul.f32 %v175, %v189
    %v192 = vmul.f32 %v176, %v189
    %v193 = vmul.f32 %v177, %v189
    %v194 = vmul.f32 %v178, %v189
    %v195 = vmul.f32 %v179, %v189
    %v196 = vmul.f32 %v180, %v189
    %v197 = vmul.f32 %v181, %v189
    %v198 = vmul.f32 %v182, %v189
    %v199 = vadd.f32 %v167, %v191
    %v200 = vadd.f32 %v168, %v192
    %v201 = vadd.f32 %v169, %v193
    %v202 = vadd.f32 %v170, %v194
    %v203 = vadd.f32 %v171, %v195
    %v204 = vadd.f32 %v172, %v196
    %v205 = vadd.f32 %v173, %v197
    %v206 = vadd.f32 %v174, %v198
    %s207 = scalar_lea.vmem %s0, 16
    %v208 = vld [vmem:[%s207] sm:$0xff]
    %v209 = vld [vmem:[%s207 + $0x10] sm:$0xff]
    %v210 = vld [vmem:[%s207 + $0x20] sm:$0xff]
    %v211 = vld [vmem:[%s207 + $0x30] sm:$0xff]
    %v212 = vld [vmem:[%s207 + $0x40] sm:$0xff]
    %v213 = vld [vmem:[%s207 + $0x50] sm:$0xff]
    %v214 = vld [vmem:[%s207 + $0x60] sm:$0xff]
    %v215 = vld [vmem:[%s207 + $0x70] sm:$0xff]
    %s216 = scalar_lea.vmem %s1, 6
    %v217 = vld [vmem:[%s216] sm:$0x1]
    %v219 = vlaneseq
    %v220 = vshrl.u32 %v219, 7
    %v221 = vsub.s32 0, %v220
    %v222 = vrot.slane %v217, %v221
    %v224 = vmul.f32 %v208, %v222
    %v225 = vmul.f32 %v209, %v222
    %v226 = vmul.f32 %v210, %v222
    %v227 = vmul.f32 %v211, %v222
    %v228 = vmul.f32 %v212, %v222
    %v229 = vmul.f32 %v213, %v222
    %v230 = vmul.f32 %v214, %v222
    %v231 = vmul.f32 %v215, %v222
    %v232 = vadd.f32 %v199, %v224
    %v233 = vadd.f32 %v200, %v225
    %v234 = vadd.f32 %v201, %v226
    %v235 = vadd.f32 %v202, %v227
    %v236 = vadd.f32 %v203, %v228
    %v237 = vadd.f32 %v204, %v229
    %v238 = vadd.f32 %v205, %v230
    %v239 = vadd.f32 %v206, %v231
    %s240 = scalar_lea.vmem %s0, 160
    %v241 = vld [vmem:[%s240] sm:$0xff]
    %v242 = vld [vmem:[%s240 + $0x10] sm:$0xff]
    %v243 = vld [vmem:[%s240 + $0x20] sm:$0xff]
    %v244 = vld [vmem:[%s240 + $0x30] sm:$0xff]
    %v245 = vld [vmem:[%s240 + $0x40] sm:$0xff]
    %v246 = vld [vmem:[%s240 + $0x50] sm:$0xff]
    %v247 = vld [vmem:[%s240 + $0x60] sm:$0xff]
    %v248 = vld [vmem:[%s240 + $0x70] sm:$0xff]
    %s249 = scalar_lea.vmem %s1, 7
    %v250 = vld [vmem:[%s249] sm:$0x1]
    %v252 = vlaneseq
    %v253 = vshrl.u32 %v252, 7
    %v254 = vsub.s32 0, %v253
    %v255 = vrot.slane %v250, %v254
    %v257 = vmul.f32 %v241, %v255
    %v258 = vmul.f32 %v242, %v255
    %v259 = vmul.f32 %v243, %v255
    %v260 = vmul.f32 %v244, %v255
    %v261 = vmul.f32 %v245, %v255
    %v262 = vmul.f32 %v246, %v255
    %v263 = vmul.f32 %v247, %v255
    %v264 = vmul.f32 %v248, %v255
    %v265 = vadd.f32 %v232, %v257
    %v266 = vadd.f32 %v233, %v258
    %v267 = vadd.f32 %v234, %v259
    %v268 = vadd.f32 %v235, %v260
    %v269 = vadd.f32 %v236, %v261
    %v270 = vadd.f32 %v237, %v262
    %v271 = vadd.f32 %v238, %v263
    %v272 = vadd.f32 %v239, %v264
    %v273 = vld [vmem:[%s207 + $0x1] sm:$0xff]
    %v274 = vld [vmem:[%s207 + $0x11] sm:$0xff]
    %v275 = vld [vmem:[%s207 + $0x21] sm:$0xff]
    %v276 = vld [vmem:[%s207 + $0x31] sm:$0xff]
    %v277 = vld [vmem:[%s207 + $0x41] sm:$0xff]
    %v278 = vld [vmem:[%s207 + $0x51] sm:$0xff]
    %v279 = vld [vmem:[%s207 + $0x61] sm:$0xff]
    %v280 = vld [vmem:[%s207 + $0x71] sm:$0xff]
    %s281 = scalar_lea.vmem %s1, 8
    %v282 = vld [vmem:[%s281] sm:$0x1]
    %v284 = vlaneseq
    %v285 = vshrl.u32 %v284, 7
    %v286 = vsub.s32 0, %v285
    %v287 = vrot.slane %v282, %v286
    %v289 = vmul.f32 %v273, %v287
    %v290 = vmul.f32 %v274, %v287
    %v291 = vmul.f32 %v275, %v287
    %v292 = vmul.f32 %v276, %v287
    %v293 = vmul.f32 %v277, %v287
    %v294 = vmul.f32 %v278, %v287
    %v295 = vmul.f32 %v279, %v287
    %v296 = vmul.f32 %v280, %v287
    %v297 = vadd.f32 %v265, %v289
    %v298 = vadd.f32 %v266, %v290
    %v299 = vadd.f32 %v267, %v291
    %v300 = vadd.f32 %v268, %v292
    %v301 = vadd.f32 %v269, %v293
    %v302 = vadd.f32 %v270, %v294
    %v303 = vadd.f32 %v271, %v295
    %v304 = vadd.f32 %v272, %v296
    %v305 = vadd.f32 %v297, %v298
    %v306 = vadd.f32 %v305, %v299
    %v307 = vadd.f32 %v306, %v300
    %v308 = vadd.f32 %v307, %v301
    %v309 = vadd.f32 %v308, %v302
    %v310 = vadd.f32 %v309, %v303
    %v311 = vadd.f32 %v310, %v304
    %v312 = vrot.slane %v311, 4
    %v313 = vadd.f32 %v311, %v312
    %v314 = vrot.slane %v313, 2
    %v315 = vadd.f32 %v313, %v314
    %v316 = vrot.slane %v315, 1
    %v317 = vadd.f32 %v315, %v316
    %v318 = vmul.f32 %v317, 0.015625
    %v319 = vmul.f32 %v297, %v297
    %v320 = vmul.f32 %v298, %v298
    %v321 = vmul.f32 %v299, %v299
    %v322 = vmul.f32 %v300, %v300
    %v323 = vmul.f32 %v301, %v301
    %v324 = vmul.f32 %v302, %v302
    %v325 = vmul.f32 %v303, %v303
    %v326 = vmul.f32 %v304, %v304
    %v327 = vadd.f32 %v319, %v320
    %v328 = vadd.f32 %v327, %v321
    %v329 = vadd.f32 %v328, %v322
    %v330 = vadd.f32 %v329, %v323
    %v331 = vadd.f32 %v330, %v324
    %v332 = vadd.f32 %v331, %v325
    %v333 = vadd.f32 %v332, %v326
    %v334 = vrot.slane %v333, 4
    %v335 = vadd.f32 %v333, %v334
    %v336 = vrot.slane %v335, 2
    %v337 = vadd.f32 %v335, %v336
    %v338 = vrot.slane %v337, 1
    %v339 = vadd.f32 %v337, %v338
    %v340 = vmul.f32 %v339, 0.015625
    %v341 = vmul.f32 %v318, %v318
    %v342 = vsub.f32 %v340, %v341
    %v343 = vmax.f32 %v342, 0.0
    %v344 = vld [vmem:[%s2] sm:$0x1]
    %v345 = vadd.f32 %v343, 1e-05
    %v346 = vrsqrt.pop %v345
    %v347 = vmul.f32 %v344, %v346
    %v348 = vld [vmem:[%s3] sm:$0x1]
    %v349 = vmul.f32 %v318, %v347
    %v350 = vsub.f32 %v348, %v349
    %v352 = vlaneseq
    %v353 = vshrl.u32 %v352, 7
    %v354 = vsub.s32 0, %v353
    %v355 = vrot.slane %v347, %v354
    %v357 = vmul.f32 %v297, %v355
    %v358 = vmul.f32 %v298, %v355
    %v359 = vmul.f32 %v299, %v355
    %v360 = vmul.f32 %v300, %v355
    %v361 = vmul.f32 %v301, %v355
    %v362 = vmul.f32 %v302, %v355
    %v363 = vmul.f32 %v303, %v355
    %v364 = vmul.f32 %v304, %v355
    %v366 = vlaneseq
    %v367 = vshrl.u32 %v366, 7
    %v368 = vsub.s32 0, %v367
    %v369 = vrot.slane %v350, %v368
    %v371 = vadd.f32 %v357, %v369
    %v372 = vadd.f32 %v358, %v369
    %v373 = vadd.f32 %v359, %v369
    %v374 = vadd.f32 %v360, %v369
    %v375 = vadd.f32 %v361, %v369
    %v376 = vadd.f32 %v362, %v369
    %v377 = vadd.f32 %v363, %v369
    %v378 = vadd.f32 %v364, %v369
    %v379 = vld [vmem:[%s4] sm:$0xff]
    %v380 = vld [vmem:[%s4 + $0x8] sm:$0xff]
    %v381 = vld [vmem:[%s4 + $0x10] sm:$0xff]
    %v382 = vld [vmem:[%s4 + $0x18] sm:$0xff]
    %v383 = vld [vmem:[%s4 + $0x20] sm:$0xff]
    %v384 = vld [vmem:[%s4 + $0x28] sm:$0xff]
    %v385 = vld [vmem:[%s4 + $0x30] sm:$0xff]
    %v386 = vld [vmem:[%s4 + $0x38] sm:$0xff]
    %v387 = vld [vmem:[%s4 + $0x40] sm:$0xff]
    %v388 = vld [vmem:[%s4 + $0x48] sm:$0xff]
    %v389 = vld [vmem:[%s4 + $0x50] sm:$0xff]
    %v390 = vld [vmem:[%s4 + $0x58] sm:$0xff]
    %v391 = vld [vmem:[%s4 + $0x60] sm:$0xff]
    %v392 = vld [vmem:[%s4 + $0x68] sm:$0xff]
    %v393 = vld [vmem:[%s4 + $0x70] sm:$0xff]
    %v394 = vld [vmem:[%s4 + $0x78] sm:$0xff]
    %395 = vmatprep.subr.mxu0 0.0
    %396 = vmatpush1.msra.mxu0 %v379
    %397 = vmatprep.subr.mxu0 0.0
    %398 = vmatpush1.msra.mxu0 %v380
    %399 = vmatprep.subr.mxu0 0.0
    %400 = vmatpush1.msra.mxu0 %v381
    %401 = vmatprep.subr.mxu0 0.0
    %402 = vmatpush1.msra.mxu0 %v382
    %403 = vmatprep.subr.mxu0 0.0
    %404 = vmatpush1.msra.mxu0 %v383
    %405 = vmatprep.subr.mxu0 0.0
    %406 = vmatpush1.msra.mxu0 %v384
    %407 = vmatprep.subr.mxu0 0.0
    %408 = vmatpush1.msra.mxu0 %v385
    %409 = vmatprep.subr.mxu0 0.0
    %410 = vmatpush1.msra.mxu0 %v386
    %411 = vmatprep.subr.mxu0 0.0
    %412 = vmatpush1.msra.mxu0 %v387
    %413 = vmatprep.subr.mxu0 0.0
    %414 = vmatpush1.msra.mxu0 %v388
    %415 = vmatprep.subr.mxu0 0.0
    %416 = vmatpush1.msra.mxu0 %v389
    %417 = vmatprep.subr.mxu0 0.0
    %418 = vmatpush1.msra.mxu0 %v390
    %419 = vmatprep.subr.mxu0 0.0
    %420 = vmatpush1.msra.mxu0 %v391
    %421 = vmatprep.subr.mxu0 0.0
    %422 = vmatpush1.msra.mxu0 %v392
    %423 = vmatprep.subr.mxu0 0.0
    %424 = vmatpush1.msra.mxu0 %v393
    %425 = vmatprep.subr.mxu0 0.0
    %426 = vmatpush1.msra.mxu0 %v394
    %427 = vmatprep.subr.mxu0 0.0
    %428 = vmatpush1.msra.mxu0 0.0
    %429 = vmatprep.subr.mxu0 0.0
    %430 = vmatpush1.msra.mxu0 0.0
    %431 = vmatprep.subr.mxu0 0.0
    %432 = vmatpush1.msra.mxu0 0.0
    %433 = vmatprep.subr.mxu0 0.0
    %434 = vmatpush1.msra.mxu0 0.0
    %435 = vmatprep.subr.mxu0 0.0
    %436 = vmatpush1.msra.mxu0 0.0
    %437 = vmatprep.subr.mxu0 0.0
    %438 = vmatpush1.msra.mxu0 0.0
    %439 = vmatprep.subr.mxu0 0.0
    %440 = vmatpush1.msra.mxu0 0.0
    %441 = vmatprep.subr.mxu0 0.0
    %442 = vmatpush1.msra.mxu0 0.0
    %443 = vmatprep.subr.mxu0 0.0
    %444 = vmatpush1.msra.mxu0 0.0
    %445 = vmatprep.subr.mxu0 0.0
    %446 = vmatpush1.msra.mxu0 0.0
    %447 = vmatprep.subr.mxu0 0.0
    %448 = vmatpush1.msra.mxu0 0.0
    %449 = vmatprep.subr.mxu0 0.0
    %450 = vmatpush1.msra.mxu0 0.0
    %451 = vmatprep.subr.mxu0 0.0
    %452 = vmatpush1.msra.mxu0 0.0
    %453 = vmatprep.subr.mxu0 0.0
    %454 = vmatpush1.msra.mxu0 0.0
    %455 = vmatprep.subr.mxu0 0.0
    %456 = vmatpush1.msra.mxu0 0.0
    %457 = vmatprep.subr.mxu0 0.0
    %458 = vmatpush1.msra.mxu0 0.0
    %459 = vmatprep.mubr.f32.mxu0 0.0
    %460 = vmatmul.mubr.f32.gmra.mrb[0].mxu0 %v371
    %v461 = vpop.f32.mrb[0].mxu0
    %v462 = vadd.f32 0.0, %v461
    %v463 = vpop.f32.mrb[0].mxu0
    %464 = vmatprep.mubr.f32.mxu0 0.0
    %465 = vmatmul.mubr.f32.gmra.mrb[0].mxu0 %v372
    %v466 = vpop.f32.mrb[0].mxu0
    %v467 = vadd.f32 0.0, %v466
    %v468 = vpop.f32.mrb[0].mxu0
    %469 = vmatprep.mubr.f32.mxu0 0.0
    %470 = vmatmul.mubr.f32.gmra.mrb[0].mxu0 %v373
    %v471 = vpop.f32.mrb[0].mxu0
    %v472 = vadd.f32 0.0, %v471
    %v473 = vpop.f32.mrb[0].mxu0
    %474 = vmatprep.mubr.f32.mxu0 0.0
    %475 = vmatmul.mubr.f32.gmra.mrb[0].mxu0 %v374
    %v476 = vpop.f32.mrb[0].mxu0
    %v477 = vadd.f32 0.0, %v476
    %v478 = vpop.f32.mrb[0].mxu0
    %479 = vmatprep.mubr.f32.mxu0 0.0
    %480 = vmatmul.mubr.f32.gmra.mrb[0].mxu0 %v375
    %v481 = vpop.f32.mrb[0].mxu0
    %v482 = vadd.f32 0.0, %v481
    %v483 = vpop.f32.mrb[0].mxu0
    %484 = vmatprep.mubr.f32.mxu0 0.0
    %485 = vmatmul.mubr.f32.gmra.mrb[0].mxu0 %v376
    %v486 = vpop.f32.mrb[0].mxu0
    %v487 = vadd.f32 0.0, %v486
    %v488 = vpop.f32.mrb[0].mxu0
    %489 = vmatprep.mubr.f32.mxu0 0.0
    %490 = vmatmul.mubr.f32.gmra.mrb[0].mxu0 %v377
    %v491 = vpop.f32.mrb[0].mxu0
    %v492 = vadd.f32 0.0, %v491
    %v493 = vpop.f32.mrb[0].mxu0
    %494 = vmatprep.mubr.f32.mxu0 0.0
    %495 = vmatmul.mubr.f32.gmra.mrb[0].mxu0 %v378
    %v496 = vpop.f32.mrb[0].mxu0
    %v497 = vadd.f32 0.0, %v496
    %v498 = vpop.f32.mrb[0].mxu0
    %499 = vdwg.mxu0
    %500 = vst [vmem:[#allocation2] sm:$0xff] %v462
    %501 = vst [vmem:[#allocation2 + $0x8] sm:$0xff] %v467
    %502 = vst [vmem:[#allocation2 + $0x10] sm:$0xff] %v472
    %503 = vst [vmem:[#allocation2 + $0x18] sm:$0xff] %v477
    %504 = vst [vmem:[#allocation2 + $0x20] sm:$0xff] %v482
    %505 = vst [vmem:[#allocation2 + $0x28] sm:$0xff] %v487
    %506 = vst [vmem:[#allocation2 + $0x30] sm:$0xff] %v492
    %507 = vst [vmem:[#allocation2 + $0x38] sm:$0xff] %v497
    // Predicated region
    $region22: #{tpu_custom_call.1} parent=1 // pred_check
      _
    $region23: #{tpu_custom_call.1} parent=1 // pred_check_branch
      %509 = sbr.rel (0) target = $region25
    $region24: #{tpu_custom_call.1} parent=1 // pred_region
      %s511 = ssub.s32 1024, 1024
      %512 = vsyncadd [#allocation3], %s511
      %s513 = sshll.u32 [#allocation2], 4
      %s514 = int_to_ptr.vmem [resolvable:$true] %s513
      %519 = dma.vmem_to_hbm [thread:$0]  %s514, 1024, %s5, [#allocation3], 128, 128, 8
    $region25: #{tpu_custom_call.1} parent=1 // pred_fallthru
      _
    // Predicated region
    $region26: #{tpu_custom_call.1} parent=1 // pred_check
      _
    $region27: #{tpu_custom_call.1} parent=1 // pred_check_branch
      %521 = sbr.rel (0) target = $region29
    $region28: #{tpu_custom_call.1} parent=1 // pred_region
      %522 = dma.done [#allocation3], 1024
    $region29: #{tpu_custom_call.1} parent=1 // pred_fallthru
      _
    %523 = vsyncpa [#allocation3], 1

</llo_original>
